<compile_context>
chip_gen: v7x
topology: tpu7x:2x2x1
jax: 0.10.0
libtpu: 0.0.40
codegen_flags: <defaults>
</compile_context>

<pallas_src>
import functools

import jax
import jax.numpy as jnp
from jax.experimental import pallas as pl
from jax.experimental.pallas import tpu as pltpu


def _round_up(x, m):
    return ((x + m - 1) // m) * m


def _choose_k_chunk(d2, target=512):
    """Largest divisor of d2 that is <= target and a multiple of 128."""
    if d2 <= target:
        return d2
    for c in (512, 384, 256, 128):
        if c <= target and d2 % c == 0:
            return c
    return d2


def _ffn_ln_kernel(x_ref, w1_ref, b1_ref, w2_ref, cp_ref, o_ref, *, eps):
    # x_ref:  (tile_m, d)            token tile (input dtype)
    # w1_ref: (nc, d, kc)            expand weight, bf16, d2-chunked
    # b1_ref: (nc, 1, kc)            expand bias, f32, d2-chunked
    # w2_ref: (nc, kc, d)            squeeze weight, bf16, d2-chunked
    # cp_ref: (3, d)                 [b2; gamma; beta], f32
    # o_ref:  (tile_m, d)
    x = x_ref[...]
    x_f32 = x.astype(jnp.float32)
    xin = x.astype(w1_ref.dtype)           # bf16 into the MXU

    num_chunks = w1_ref.shape[0]
    tile_m = x.shape[0]
    d = o_ref.shape[-1]

    def ffn_chunk(c, acc):
        # expand column-block: (tile_m, d) @ (d, kc) -> f32
        h = jnp.dot(xin, w1_ref[c], preferred_element_type=jnp.float32)
        h = jnp.maximum(h + b1_ref[c], 0.0)             # bias + ReLU in f32
        # squeeze accumulate: (tile_m, kc) @ (kc, d) -> f32 accumulator
        return acc + jnp.dot(h.astype(w2_ref.dtype), w2_ref[c],
                             preferred_element_type=jnp.float32)

    acc0 = jnp.zeros((tile_m, d), jnp.float32)
    if num_chunks == 1:
        y = ffn_chunk(0, acc0)
    else:
        y = jax.lax.fori_loop(0, num_chunks, ffn_chunk, acc0)

    # dropout(None) -> identity.  Residual + LayerNorm, all f32.
    z = x_f32 + y + cp_ref[0:1, :]                       # + squeeze bias b2
    inv_d = 1.0 / d
    s1 = jnp.sum(z, axis=-1, keepdims=True)              # one pass over z
    s2 = jnp.sum(z * z, axis=-1, keepdims=True)
    mean = s1 * inv_d
    var = s2 * inv_d - mean * mean
    zn = (z - mean) * jax.lax.rsqrt(var + eps)
    o_ref[...] = (zn * cp_ref[1:2, :] + cp_ref[2:3, :]).astype(o_ref.dtype)


def prepare_params(params, *, compute_dtype=jnp.bfloat16, k_chunk_target=512):
    """One-time parameter prep: bf16 cast, d2-chunked layout, packed LN consts."""
    w1 = jnp.asarray(params["w1"])            # (d, 2d)
    w2 = jnp.asarray(params["w2"])            # (2d, d)
    d, d2 = w1.shape
    k_chunk = _choose_k_chunk(d2, k_chunk_target)
    nc = d2 // k_chunk
    w1c = w1.astype(compute_dtype).reshape(d, nc, k_chunk).transpose(1, 0, 2)
    w2c = w2.astype(compute_dtype).reshape(nc, k_chunk, d)
    b1c = jnp.asarray(params["b1"]).astype(jnp.float32).reshape(nc, 1, k_chunk)
    cparams = jnp.stack([jnp.asarray(params["b2"]),
                         jnp.asarray(params["gamma"]),
                         jnp.asarray(params["beta"])]).astype(jnp.float32)
    return {"w1c": w1c, "b1c": b1c, "w2c": w2c, "cparams": cparams,
            "d_model": int(d), "d2": int(d2), "k_chunk": int(k_chunk),
            "num_chunks": int(nc), "compute_dtype": compute_dtype}


def attention_output_forward(x, prepared, *, eps=1e-5, tile_m=None):
    """x: (batch, seq, d_model) -> (batch, seq, d_model)."""
    batch, seq, d = x.shape
    assert d == prepared["d_model"]
    d2 = prepared["d2"]
    k_chunk = prepared["k_chunk"]
    nc = prepared["num_chunks"]
    n = batch * seq
    x2d = x.reshape(n, d)

    w_item = jnp.dtype(prepared["compute_dtype"]).itemsize
    x_item = x2d.dtype.itemsize

    # Per-generation VMEM capacity (v7x: 64 MiB, v5e/v6e: 128 MiB).
    try:
        vmem_cap = int(pltpu.get_tpu_info().vmem_capacity_bytes)
    except Exception:  # be conservative if the query is unavailable
        vmem_cap = 64 << 20
    budget = int(vmem_cap * 0.75)            # headroom for Mosaic scratch

    def vmem_needed(tm):
        const = 2 * d * d2 * w_item + d2 * 4 + 3 * d * 4   # W1+W2 (x1) + biases/LN
        io = 2 * 2 * tm * d * x_item                        # x & out, double-buffered
        interm = tm * (k_chunk + 5 * d) * 4                 # h chunk + f32 temps
        return const + io + interm

    if tile_m is None:
        tile_m = 512 if vmem_cap >= (96 << 20) else 256
    # Ensure a multi-step grid (>= ~4 steps) so v7x's two TensorCores both get
    # work and DMA prefetch overlaps compute; then shrink if VMEM requires it.
    tile_m = max(8, min(_round_up(tile_m, 8), _round_up(max(n // 4, 1), 8)))
    while tile_m > 64 and vmem_needed(tile_m) > budget:
        tile_m = _round_up(tile_m // 2, 8)

    grid = (pl.cdiv(n, tile_m),)             # partial last block is masked

    vmem_limit = min(int(vmem_needed(tile_m) * 1.5) + (4 << 20), budget)
    vmem_limit = max(vmem_limit, min(32 << 20, budget))

    cost = pl.CostEstimate(
        flops=2 * 2 * n * d * d2,            # two matmuls
        transcendentals=n,                   # one rsqrt per token
        bytes_accessed=(2 * n * d * x_item + 2 * d * d2 * w_item
                        + (d2 + 3 * d) * 4),
    )

    # Constant blocks never change their block index -> single-buffer them so
    # VMEM goes to bigger token tiles instead.
    def _const_spec(shape, index_map):
        return pl.BlockSpec(shape, index_map, pipeline_mode=pl.Buffered(1))

    out2d = pl.pallas_call(
        functools.partial(_ffn_ln_kernel, eps=eps),
        out_shape=jax.ShapeDtypeStruct((n, d), x.dtype),
        grid_spec=pltpu.PrefetchScalarGridSpec(
            num_scalar_prefetch=0,
            grid=grid,
            in_specs=[
                pl.BlockSpec((tile_m, d), lambda i: (i, 0)),        # x tile
                _const_spec((nc, d, k_chunk), lambda i: (0, 0, 0)),  # W1 chunks
                _const_spec((nc, 1, k_chunk), lambda i: (0, 0, 0)),  # b1 chunks
                _const_spec((nc, k_chunk, d), lambda i: (0, 0, 0)),  # W2 chunks
                _const_spec((3, d), lambda i: (0, 0)),               # b2/gamma/beta
            ],
            out_specs=pl.BlockSpec((tile_m, d), lambda i: (i, 0)),
        ),
        compiler_params=pltpu.CompilerParams(
            dimension_semantics=("parallel",),
            vmem_limit_bytes=int(vmem_limit)),
        cost_estimate=cost,
    )(x2d, prepared["w1c"], prepared["b1c"], prepared["w2c"],
      prepared["cparams"])

    return out2d.reshape(batch, seq, d)


def init_params(key, d_model):
    """Deterministic param init mirroring nn.Linear / nn.LayerNorm shapes."""
    d2 = d_model * 2
    k1, k2, k3, k4 = jax.random.split(key, 4)
    lim1 = 1.0 / jnp.sqrt(d_model)
    lim2 = 1.0 / jnp.sqrt(d2)
    return {
        # stored as (in, out): kernel computes x @ W, same math as PyTorch's
        # x @ weight.T with weight of shape (out, in).
        "w1": jax.random.uniform(k1, (d_model, d2), jnp.float32, -lim1, lim1),
        "b1": jax.random.uniform(k2, (d2,), jnp.float32, -lim1, lim1),
        "w2": jax.random.uniform(k3, (d2, d_model), jnp.float32, -lim2, lim2),
        "b2": jax.random.uniform(k4, (d_model,), jnp.float32, -lim2, lim2),
        "gamma": jnp.ones((d_model,), jnp.float32),
        "beta": jnp.zeros((d_model,), jnp.float32),
    }


def reference_forward(x, params, eps=1e-5, compute_dtype=jnp.float32):
    """Pure-JAX reference of the PyTorch forward (eval mode)."""
    w1 = params["w1"].astype(compute_dtype)
    w2 = params["w2"].astype(compute_dtype)
    h = jnp.dot(x.astype(compute_dtype), w1, preferred_element_type=jnp.float32)
    h = jnp.maximum(h + params["b1"], 0.0)
    y = jnp.dot(h.astype(compute_dtype), w2,
                preferred_element_type=jnp.float32) + params["b2"]
    z = x.astype(jnp.float32) + y
    mean = jnp.mean(z, axis=-1, keepdims=True)
    var = jnp.mean((z - mean) ** 2, axis=-1, keepdims=True)
    zn = (z - mean) * jax.lax.rsqrt(var + eps)
    return zn * params["gamma"] + params["beta"]


if __name__ == "__main__":
    key = jax.random.PRNGKey(0)
    kx, kp, kx2, kp2 = jax.random.split(key, 4)

    # Config 1: small, module-consistent shapes (single d2 chunk, exact tiles).
    batch, seq, d_model = 2, 8, 32
    x = jax.random.normal(kx, (batch, seq, d_model), jnp.float32)
    params = init_params(kp, d_model)
    prepared = prepare_params(params)
    out = jax.block_until_ready(attention_output_forward(x, prepared))
    assert out.shape == (batch, seq, d_model)

    ref_bf16 = reference_forward(x, params, compute_dtype=jnp.bfloat16)
    err_bf16 = float(jnp.max(jnp.abs(out - ref_bf16)))
    assert jnp.allclose(out, ref_bf16, atol=3e-3, rtol=3e-3), err_bf16
    ref_f32 = reference_forward(x, params, compute_dtype=jnp.float32)
    err_f32 = float(jnp.max(jnp.abs(out - ref_f32)))
    assert jnp.allclose(out, ref_f32, atol=5e-2, rtol=5e-2), err_f32

    # Config 2: exercises the d2-chunked fori_loop path and a partial last
    # token tile (n % tile_m != 0, handled without any jnp.pad round trip).
    batch2, seq2, d_model2 = 2, 77, 384
    x2 = jax.random.normal(kx2, (batch2, seq2, d_model2), jnp.float32)
    params2 = init_params(kp2, d_model2)
    prepared2 = prepare_params(params2)
    out2 = jax.block_until_ready(attention_output_forward(x2, prepared2))
    assert out2.shape == (batch2, seq2, d_model2)
    ref2 = reference_forward(x2, params2, compute_dtype=jnp.float32)
    err2 = float(jnp.max(jnp.abs(out2 - ref2)))
    assert jnp.allclose(out2, ref2, atol=5e-2, rtol=5e-2), err2

    print("KERNEL_OK")
</pallas_src>

<mosaic_0001>
module attributes {stable_mosaic.version = 11 : i64} {
  func.func @_ffn_ln_kernel(%arg0: i32, %arg1: memref<8x32xf32, #tpu.memory_space<vmem>>, %arg2: memref<1x32x64xbf16, #tpu.memory_space<vmem>>, %arg3: memref<1x1x64xf32, #tpu.memory_space<vmem>>, %arg4: memref<1x64x32xbf16, #tpu.memory_space<vmem>>, %arg5: memref<3x32xf32, #tpu.memory_space<vmem>>, %arg6: memref<8x32xf32, #tpu.memory_space<vmem>>) attributes {dimension_semantics = [#tpu.dimension_semantics<parallel>], iteration_bounds = array<i64: 2>, scalar_prefetch = 0 : i64, scratch_operands = 0 : i64, tpu.core_type = #tpu.core_type<tc>, window_params = [{transform_indices = @transform_0, window_bounds = array<i64: 8, 32>}, {pipeline_mode = #tpu.pipeline_mode<synchronous>, transform_indices = @transform_1, window_bounds = array<i64: 1, 32, 64>}, {pipeline_mode = #tpu.pipeline_mode<synchronous>, transform_indices = @transform_2, window_bounds = array<i64: 1, 1, 64>}, {pipeline_mode = #tpu.pipeline_mode<synchronous>, transform_indices = @transform_3, window_bounds = array<i64: 1, 64, 32>}, {pipeline_mode = #tpu.pipeline_mode<synchronous>, transform_indices = @transform_4, window_bounds = array<i64: 3, 32>}, {transform_indices = @transform_5, window_bounds = array<i64: 8, 32>}]} {
    %c0 = arith.constant 0 : index
    %c0_0 = arith.constant 0 : index
    %0 = vector.load %arg1[%c0, %c0_0] : memref<8x32xf32, #tpu.memory_space<vmem>>, vector<8x32xf32>
    %1 = arith.truncf %0 : vector<8x32xf32> to vector<8x32xbf16>
    %cst = arith.constant 0.000000e+00 : f32
    %2 = vector.broadcast %cst : f32 to vector<8x32xf32>
    %c0_1 = arith.constant 0 : index
    %c0_2 = arith.constant 0 : index
    %c0_3 = arith.constant 0 : index
    %3 = vector.load %arg2[%c0_1, %c0_2, %c0_3] : memref<1x32x64xbf16, #tpu.memory_space<vmem>>, vector<1x32x64xbf16>
    %4 = vector.shape_cast %3 : vector<1x32x64xbf16> to vector<32x64xbf16>
    %cst_4 = arith.constant dense<0.000000e+00> : vector<8x64xf32>
    %5 = tpu.matmul %1, %4, %cst_4 {dimension_numbers = #tpu.dot_dimension_numbers<[1], [0], [0], [1], [0, 0, 1, 1], [], []>} : vector<8x32xbf16>, vector<32x64xbf16>, vector<8x64xf32> -> vector<8x64xf32>
    %c0_5 = arith.constant 0 : index
    %c0_6 = arith.constant 0 : index
    %c0_7 = arith.constant 0 : index
    %6 = vector.load %arg3[%c0_5, %c0_6, %c0_7] : memref<1x1x64xf32, #tpu.memory_space<vmem>>, vector<1x1x64xf32>
    %7 = vector.shape_cast %6 : vector<1x1x64xf32> to vector<1x64xf32>
    %8 = vector.broadcast %7 : vector<1x64xf32> to vector<8x64xf32>
    %9 = arith.addf %5, %8 : vector<8x64xf32>
    %cst_8 = arith.constant 0.000000e+00 : f32
    %10 = vector.broadcast %cst_8 : f32 to vector<8x64xf32>
    %11 = arith.maximumf %9, %10 : vector<8x64xf32>
    %12 = arith.truncf %11 : vector<8x64xf32> to vector<8x64xbf16>
    %c0_9 = arith.constant 0 : index
    %c0_10 = arith.constant 0 : index
    %c0_11 = arith.constant 0 : index
    %13 = vector.load %arg4[%c0_9, %c0_10, %c0_11] : memref<1x64x32xbf16, #tpu.memory_space<vmem>>, vector<1x64x32xbf16>
    %14 = vector.shape_cast %13 : vector<1x64x32xbf16> to vector<64x32xbf16>
    %cst_12 = arith.constant dense<0.000000e+00> : vector<8x32xf32>
    %15 = tpu.matmul %12, %14, %cst_12 {dimension_numbers = #tpu.dot_dimension_numbers<[1], [0], [0], [1], [0, 0, 1, 1], [], []>} : vector<8x64xbf16>, vector<64x32xbf16>, vector<8x32xf32> -> vector<8x32xf32>
    %16 = arith.addf %2, %15 : vector<8x32xf32>
    %17 = arith.addf %0, %16 : vector<8x32xf32>
    %c0_13 = arith.constant 0 : index
    %c0_14 = arith.constant 0 : index
    %18 = vector.load %arg5[%c0_13, %c0_14] : memref<3x32xf32, #tpu.memory_space<vmem>>, vector<1x32xf32>
    %19 = vector.broadcast %18 : vector<1x32xf32> to vector<8x32xf32>
    %20 = arith.addf %17, %19 : vector<8x32xf32>
    %cst_15 = arith.constant dense<0.000000e+00> : vector<8xf32>
    %21 = vector.multi_reduction <add>, %20, %cst_15 [1] : vector<8x32xf32> to vector<8xf32>
    %22 = vector.shape_cast %21 : vector<8xf32> to vector<8x1xf32>
    %23 = arith.mulf %20, %20 : vector<8x32xf32>
    %cst_16 = arith.constant dense<0.000000e+00> : vector<8xf32>
    %24 = vector.multi_reduction <add>, %23, %cst_16 [1] : vector<8x32xf32> to vector<8xf32>
    %25 = vector.shape_cast %24 : vector<8xf32> to vector<8x1xf32>
    %cst_17 = arith.constant 3.125000e-02 : f32
    %26 = vector.broadcast %cst_17 : f32 to vector<8x1xf32>
    %27 = arith.mulf %22, %26 : vector<8x1xf32>
    %cst_18 = arith.constant 3.125000e-02 : f32
    %28 = vector.broadcast %cst_18 : f32 to vector<8x1xf32>
    %29 = arith.mulf %25, %28 : vector<8x1xf32>
    %30 = arith.mulf %27, %27 : vector<8x1xf32>
    %31 = arith.subf %29, %30 : vector<8x1xf32>
    %32 = vector.broadcast %27 : vector<8x1xf32> to vector<8x32xf32>
    %33 = arith.subf %20, %32 : vector<8x32xf32>
    %cst_19 = arith.constant 9.99999974E-6 : f32
    %34 = vector.broadcast %cst_19 : f32 to vector<8x1xf32>
    %35 = arith.addf %31, %34 : vector<8x1xf32>
    %36 = math.rsqrt %35 : vector<8x1xf32>
    %37 = vector.broadcast %36 : vector<8x1xf32> to vector<8x32xf32>
    %38 = arith.mulf %33, %37 : vector<8x32xf32>
    %c1 = arith.constant 1 : index
    %c0_20 = arith.constant 0 : index
    %39 = vector.load %arg5[%c1, %c0_20] : memref<3x32xf32, #tpu.memory_space<vmem>>, vector<1x32xf32>
    %40 = vector.broadcast %39 : vector<1x32xf32> to vector<8x32xf32>
    %41 = arith.mulf %38, %40 : vector<8x32xf32>
    %c2 = arith.constant 2 : index
    %c0_21 = arith.constant 0 : index
    %42 = vector.load %arg5[%c2, %c0_21] : memref<3x32xf32, #tpu.memory_space<vmem>>, vector<1x32xf32>
    %43 = vector.broadcast %42 : vector<1x32xf32> to vector<8x32xf32>
    %44 = arith.addf %41, %43 : vector<8x32xf32>
    %c0_22 = arith.constant 0 : index
    %c0_23 = arith.constant 0 : index
    %45 = vector.load %arg6[%c0_22, %c0_23] : memref<8x32xf32, #tpu.memory_space<vmem>>, vector<8x32xf32>
    tpu.vector_store %arg6[%c0_22, %c0_23], %44 {strides = array<i32>} : memref<8x32xf32, #tpu.memory_space<vmem>>, vector<8x32xf32>,
    return
  }
  func.func @transform_0(%arg0: i32) -> (i32, i32) {
    %c0_i32 = arith.constant 0 : i32
    %c0_i32_0 = arith.constant 0 : i32
    return %arg0, %c0_i32 : i32, i32
  }
  func.func @transform_1(%arg0: i32) -> (i32, i32, i32) {
    %c0_i32 = arith.constant 0 : i32
    %c0_i32_0 = arith.constant 0 : i32
    %c0_i32_1 = arith.constant 0 : i32
    %c0_i32_2 = arith.constant 0 : i32
    return %c0_i32, %c0_i32_0, %c0_i32_1 : i32, i32, i32
  }
  func.func @transform_2(%arg0: i32) -> (i32, i32, i32) {
    %c0_i32 = arith.constant 0 : i32
    %c0_i32_0 = arith.constant 0 : i32
    %c0_i32_1 = arith.constant 0 : i32
    %c0_i32_2 = arith.constant 0 : i32
    return %c0_i32, %c0_i32_0, %c0_i32_1 : i32, i32, i32
  }
  func.func @transform_3(%arg0: i32) -> (i32, i32, i32) {
    %c0_i32 = arith.constant 0 : i32
    %c0_i32_0 = arith.constant 0 : i32
    %c0_i32_1 = arith.constant 0 : i32
    %c0_i32_2 = arith.constant 0 : i32
    return %c0_i32, %c0_i32_0, %c0_i32_1 : i32, i32, i32
  }
  func.func @transform_4(%arg0: i32) -> (i32, i32) {
    %c0_i32 = arith.constant 0 : i32
    %c0_i32_0 = arith.constant 0 : i32
    %c0_i32_1 = arith.constant 0 : i32
    return %c0_i32, %c0_i32_0 : i32, i32
  }
  func.func @transform_5(%arg0: i32) -> (i32, i32) {
    %c0_i32 = arith.constant 0 : i32
    %c0_i32_0 = arith.constant 0 : i32
    return %arg0, %c0_i32 : i32, i32
  }
}

</mosaic_0001>

<llo_original>
// kernel: tpu_custom_call.1
$region0: #{tpu_custom_call.1}
  #allocation0 [shape = 'u32[]', space=smem, size = 0x4, offset = 0x4, fixed_abs, tag = 'smem constant byte address 0x4 - core index']
  #allocation1 [shape = 'u32[144,128]{1,0:T(1,128)}', space=vmem, size = 0x12000, scoped, tag = 'internal scratch']
  %s0 = inlined_call_operand.vmem [shape: f32[16,32], index: 0, kind: input, shape index: {}]
  %s1 = inlined_call_operand.vmem [shape: bf16[1,32,64], index: 1, kind: input, shape index: {}]
  %s2 = inlined_call_operand.vmem [shape: f32[1,1,64], index: 2, kind: input, shape index: {}]
  %s3 = inlined_call_operand.vmem [shape: bf16[1,64,32], index: 3, kind: input, shape index: {}]
  %s4 = inlined_call_operand.vmem [shape: f32[3,32], index: 4, kind: input, shape index: {}]
  %s5 = inlined_call_operand.hbm [shape: f32[16,32], index: 5, kind: output, shape index: {}]
  %s6 = sld [smem:[#allocation0]]
  $region53: #{tpu_custom_call.1} parent=0
    _
  %s8 = ssub.s32 1, %s6
  %s9 = scalar_select 0, %s8, %s6
  $region1: #{tpu_custom_call.1} parent=0
    #allocation2 [shape = 'u8[8192]{0}', space=vmem, size = 0x2000, scoped, tag = 'output window, operand 0']
    #allocation3 [shape = 's32[2]{0}', space=sflag, size = 0x8, scoped, tag = 'scoped memory for tpu_custom_call.1']
    %10 = vsyncpa [#allocation3], 0
    %s11 = scalar_lea.sflag [#allocation3], 1
    %12 = vsyncpa %s11, 0
    loop: start=0, step=1, limit=4
    $region2: #{tpu_custom_call.1} parent=1 // loop_pre_header
      _
    $region3: #{tpu_custom_call.1} parent=1 // loop_header
      %s14 = sphi 0, %s18
      %p15 = scmp.ge.s32.totalorder %s14, 4
      %s24 = sphi 0, %s26
      %s27 = sphi 0, %s24
      %s28 = sphi 0, %s27
      %s44 = sphi 0, %s28
      %s48 = sphi 0, %s48
      %s50 = sphi 0, %s48
      %s51 = sphi 0, %s50
      %s65 = sphi 0, %s51
      %s69 = sphi 0, %s69
      %s71 = sphi 0, %s69
      %s72 = sphi 0, %s71
      %s86 = sphi 0, %s72
      %s90 = sphi 0, %s90
      %s92 = sphi 0, %s90
      %s93 = sphi 0, %s92
      %s107 = sphi 0, %s93
      %s111 = sphi 0, %s111
      %s113 = sphi 0, %s111
      %s114 = sphi 0, %s113
      %s128 = sphi 0, %s114
      %s134 = sphi 0, %s136
      %s137 = sphi 0, %s134
      %s138 = sphi 0, %s137
      %s154 = sphi 0, %s138
    $region4: #{tpu_custom_call.1} parent=1 // loop_header_branch
      %17 = sbr.rel (%p15) target = $region8
    $region5: #{tpu_custom_call.1} parent=1 // loop_body
      %s19 = ssub.s32 %s14, 1
      %s20 = ssub.s32 %s14, 2
      %s21 = sadd.s32 %s14, 1
      %s22 = ssub.s32 %s14, %s21
      %p23 = scmp.eq.s32.totalorder %s22, 0
      %s25 = sadd.s32 %s24, 1
      %s26 = scalar_select %p23, %s24, %s25
      %p29 = pneg %p23
      %p30 = scmp.eq.s32.totalorder %s14, 1
      %p31 = por %p29, %p30
      %p32 = scmp.ne.s32.totalorder %s24, %s27
      %p33 = scmp.eq.s32.totalorder %s14, 0
      %p34 = por %p32, %p33
      %p35 = scmp.ne.s32.totalorder %s24, %s27
      %p36 = scmp.eq.s32.totalorder %s19, 1
      %p37 = por %p35, %p36
      %p38 = scmp.ne.s32.totalorder %s27, %s28
      %p39 = scmp.eq.s32.totalorder %s19, 0
      %p40 = por %p38, %p39
      %p41 = scmp.ne.s32.totalorder %s27, %s28
      %p42 = scmp.eq.s32.totalorder %s20, 1
      %p43 = por %p41, %p42
      %p45 = scmp.ne.s32.totalorder %s28, %s44
      %p46 = scmp.eq.s32.totalorder %s20, 0
      %p47 = por %p45, %p46
      %s49 = sadd.s32 %s48, 1
      %p52 = scmp.eq.s32.totalorder %s14, 1
      %p53 = scmp.ne.s32.totalorder %s48, %s50
      %p54 = scmp.eq.s32.totalorder %s14, 0
      %p55 = por %p53, %p54
      %p56 = scmp.ne.s32.totalorder %s48, %s50
      %p57 = scmp.eq.s32.totalorder %s19, 1
      %p58 = por %p56, %p57
      %p59 = scmp.ne.s32.totalorder %s50, %s51
      %p60 = scmp.eq.s32.totalorder %s19, 0
      %p61 = por %p59, %p60
      %p62 = scmp.ne.s32.totalorder %s50, %s51
      %p63 = scmp.eq.s32.totalorder %s20, 1
      %p64 = por %p62, %p63
      %p66 = scmp.ne.s32.totalorder %s51, %s65
      %p67 = scmp.eq.s32.totalorder %s20, 0
      %p68 = por %p66, %p67
      %s70 = sadd.s32 %s69, 1
      %p73 = scmp.eq.s32.totalorder %s14, 1
      %p74 = scmp.ne.s32.totalorder %s69, %s71
      %p75 = scmp.eq.s32.totalorder %s14, 0
      %p76 = por %p74, %p75
      %p77 = scmp.ne.s32.totalorder %s69, %s71
      %p78 = scmp.eq.s32.totalorder %s19, 1
      %p79 = por %p77, %p78
      %p80 = scmp.ne.s32.totalorder %s71, %s72
      %p81 = scmp.eq.s32.totalorder %s19, 0
      %p82 = por %p80, %p81
      %p83 = scmp.ne.s32.totalorder %s71, %s72
      %p84 = scmp.eq.s32.totalorder %s20, 1
      %p85 = por %p83, %p84
      %p87 = scmp.ne.s32.totalorder %s72, %s86
      %p88 = scmp.eq.s32.totalorder %s20, 0
      %p89 = por %p87, %p88
      %s91 = sadd.s32 %s90, 1
      %p94 = scmp.eq.s32.totalorder %s14, 1
      %p95 = scmp.ne.s32.totalorder %s90, %s92
      %p96 = scmp.eq.s32.totalorder %s14, 0
      %p97 = por %p95, %p96
      %p98 = scmp.ne.s32.totalorder %s90, %s92
      %p99 = scmp.eq.s32.totalorder %s19, 1
      %p100 = por %p98, %p99
      %p101 = scmp.ne.s32.totalorder %s92, %s93
      %p102 = scmp.eq.s32.totalorder %s19, 0
      %p103 = por %p101, %p102
      %p104 = scmp.ne.s32.totalorder %s92, %s93
      %p105 = scmp.eq.s32.totalorder %s20, 1
      %p106 = por %p104, %p105
      %p108 = scmp.ne.s32.totalorder %s93, %s107
      %p109 = scmp.eq.s32.totalorder %s20, 0
      %p110 = por %p108, %p109
      %s112 = sadd.s32 %s111, 1
      %p115 = scmp.eq.s32.totalorder %s14, 1
      %p116 = scmp.ne.s32.totalorder %s111, %s113
      %p117 = scmp.eq.s32.totalorder %s14, 0
      %p118 = por %p116, %p117
      %p119 = scmp.ne.s32.totalorder %s111, %s113
      %p120 = scmp.eq.s32.totalorder %s19, 1
      %p121 = por %p119, %p120
      %p122 = scmp.ne.s32.totalorder %s113, %s114
      %p123 = scmp.eq.s32.totalorder %s19, 0
      %p124 = por %p122, %p123
      %p125 = scmp.ne.s32.totalorder %s113, %s114
      %p126 = scmp.eq.s32.totalorder %s20, 1
      %p127 = por %p125, %p126
      %p129 = scmp.ne.s32.totalorder %s114, %s128
      %p130 = scmp.eq.s32.totalorder %s20, 0
      %p131 = por %p129, %p130
      %s132 = ssub.s32 %s14, %s21
      %p133 = scmp.eq.s32.totalorder %s132, 0
      %s135 = sadd.s32 %s134, 1
      %s136 = scalar_select %p133, %s134, %s135
      %p139 = pneg %p133
      %p140 = scmp.eq.s32.totalorder %s14, 1
      %p141 = por %p139, %p140
      %p142 = scmp.ne.s32.totalorder %s134, %s137
      %p143 = scmp.eq.s32.totalorder %s14, 0
      %p144 = por %p142, %p143
      %p145 = scmp.ne.s32.totalorder %s134, %s137
      %p146 = scmp.eq.s32.totalorder %s19, 1
      %p147 = por %p145, %p146
      %p148 = scmp.ne.s32.totalorder %s137, %s138
      %p149 = scmp.eq.s32.totalorder %s19, 0
      %p150 = por %p148, %p149
      %p151 = scmp.ne.s32.totalorder %s137, %s138
      %p152 = scmp.eq.s32.totalorder %s20, 1
      %p153 = por %p151, %p152
      %p155 = scmp.ne.s32.totalorder %s138, %s154
      %p156 = scmp.eq.s32.totalorder %s20, 0
      %p157 = por %p155, %p156
      %p158 = scmp.le.s32.totalorder 1, %s14
      %p159 = scmp.lt.s32.totalorder %s14, 3
      %p160 = pnand %p158, %p159
      %p161 = pneg %p160
      // Predicated region
      $region9: #{tpu_custom_call.1} parent=5 // pred_check
        _
      $region10: #{tpu_custom_call.1} parent=5 // pred_check_branch
        %163 = sbr.rel (%p160) target = $region12
      $region11: #{tpu_custom_call.1} parent=5 // pred_region
        %s164 = ssub.s32 %s14, 1
        // Predicated region
        $region13: #{tpu_custom_call.1} parent=11 // pred_check
          %p165 = pneg %p61
        $region14: #{tpu_custom_call.1} parent=11 // pred_check_branch
          %167 = sbr.rel (%p165) target = $region16
        $region15: #{tpu_custom_call.1} parent=11 // pred_region
          _
        $region16: #{tpu_custom_call.1} parent=11 // pred_fallthru
          _
        // Predicated region
        $region17: #{tpu_custom_call.1} parent=11 // pred_check
          %p168 = pneg %p82
        $region18: #{tpu_custom_call.1} parent=11 // pred_check_branch
          %170 = sbr.rel (%p168) target = $region20
        $region19: #{tpu_custom_call.1} parent=11 // pred_region
          _
        $region20: #{tpu_custom_call.1} parent=11 // pred_fallthru
          _
        // Predicated region
        $region21: #{tpu_custom_call.1} parent=11 // pred_check
          %p171 = pneg %p103
        $region22: #{tpu_custom_call.1} parent=11 // pred_check_branch
          %173 = sbr.rel (%p171) target = $region24
        $region23: #{tpu_custom_call.1} parent=11 // pred_region
          _
        $region24: #{tpu_custom_call.1} parent=11 // pred_fallthru
          _
        // Predicated region
        $region25: #{tpu_custom_call.1} parent=11 // pred_check
          %p174 = pneg %p124
        $region26: #{tpu_custom_call.1} parent=11 // pred_check_branch
          %176 = sbr.rel (%p174) target = $region28
        $region27: #{tpu_custom_call.1} parent=11 // pred_region
          _
        $region28: #{tpu_custom_call.1} parent=11 // pred_fallthru
          _
      $region12: #{tpu_custom_call.1} parent=5 // pred_fallthru
        _
      %p177 = scmp.lt.s32.totalorder %s14, 2
      // Predicated region
      $region29: #{tpu_custom_call.1} parent=5 // pred_check
        %p178 = pneg %p177
      $region30: #{tpu_custom_call.1} parent=5 // pred_check_branch
        %180 = sbr.rel (%p178) target = $region32
      $region31: #{tpu_custom_call.1} parent=5 // pred_region
        // Predicated region
        $region33: #{tpu_custom_call.1} parent=31 // pred_check
          %p181 = pneg %p34
        $region34: #{tpu_custom_call.1} parent=31 // pred_check_branch
          %183 = sbr.rel (%p181) target = $region36
        $region35: #{tpu_custom_call.1} parent=31 // pred_region
          %p184 = scmp.lt.s32.totalorder %s14, 1
          %s185 = scalar_select %p184, %s14, 1
          %s186 = smul.addr %s185, 8
          %s187 = scalar_lea.vmem %s0, %s186
        $region36: #{tpu_custom_call.1} parent=31 // pred_fallthru
          _
      $region32: #{tpu_custom_call.1} parent=5 // pred_fallthru
        _
      %p188 = scmp.le.s32.totalorder 1, %s14
      %p189 = scmp.lt.s32.totalorder %s14, 3
      %p190 = pnand %p188, %p189
      %p191 = pneg %p190
      // Predicated region
      $region37: #{tpu_custom_call.1} parent=5 // pred_check
        _
      $region38: #{tpu_custom_call.1} parent=5 // pred_check_branch
        %193 = sbr.rel (%p190) target = $region40
      $region39: #{tpu_custom_call.1} parent=5 // pred_region
        %s194 = ssub.s32 %s14, 1
        %p195 = scmp.lt.s32.totalorder %s19, 1
        %s196 = scalar_select %p195, %s19, 1
        %s197 = smul.addr %s196, 8
        %s198 = scalar_lea.vmem %s0, %s197
        %p199 = pneg %p40
        %p200 = pneg %p37
        %p201 = pneg %p61
        %p202 = pneg %p58
        %p203 = pneg %p82
        %p204 = pneg %p79
        %p205 = pneg %p103
        %p206 = pneg %p100
        %p207 = pneg %p124
        %p208 = pneg %p121
        %p209 = pneg %p150
        %p210 = pneg %p147
        %s211 = sand.u32 %s137, 1
        %s212 = scalar_lea.sflag [#allocation3], %s211
        %s213 = sand.u32 %s137, 1
        %s214 = smul.addr %s213, 8
        %s215 = scalar_lea.vmem [#allocation2], %s214
        %p216 = scmp.lt.s32.totalorder %s19, 1
        %s217 = scalar_select %p216, %s19, 1
        %s218 = smul.addr %s217, 8
        %s219 = scalar_lea.vmem %s0, %s218
        %v221 = vld [vmem:[%s219] sm:$0xff]
        %v222 = vpack.c.bf16 %v221, %v221
        %v223 = vld [vmem:[%s1] sm:$0xf]
        %v224 = vld [vmem:[%s1 + $0x4] sm:$0xf]
        %v225 = vld [vmem:[%s1 + $0x8] sm:$0xf]
        %v226 = vld [vmem:[%s1 + $0xc] sm:$0xf]
        %v227 = vld [vmem:[%s2] sm:$0x1]
        %v229 = vlaneseq
        %v230 = vshrl.u32 %v229, 7
        %v231 = vsub.s32 0, %v230
        %v232 = vrot.slane %v227, %v231
        %v238 = vunpack.c.l.b16 %v223
        %v239 = vunpack.c.l.b16 %v224
        %v240 = vunpack.c.l.b16 %v225
        %v241 = vunpack.c.l.b16 %v226
        %v242 = vpack.c.b16 %v239, %v238
        %v243 = vpack.c.b16 %v241, %v240
        %vm246 = vcmask 261120
        %v248 = vsel %vm246, %v222, 0
        %250 = vmatprep.subr.bf16.mxu0 0
        %251 = vmatpush1.bf16.msra.mxu0 %v242
        %252 = vmatprep.subr.bf16.mxu0 0
        %253 = vmatpush1.bf16.msra.mxu0 %v243
        %254 = vmatprep.subr.bf16.mxu0 0
        %255 = vmatpush1.bf16.msra.mxu0 0
        %256 = vmatprep.subr.bf16.mxu0 0
        %257 = vmatpush1.bf16.msra.mxu0 0
        %258 = vmatprep.subr.bf16.mxu0 0
        %259 = vmatpush1.bf16.msra.mxu0 0
        %260 = vmatprep.subr.bf16.mxu0 0
        %261 = vmatpush1.bf16.msra.mxu0 0
        %262 = vmatprep.subr.bf16.mxu0 0
        %263 = vmatpush1.bf16.msra.mxu0 0
        %264 = vmatprep.subr.bf16.mxu0 0
        %265 = vmatpush1.bf16.msra.mxu0 0
        %266 = vmatprep.subr.bf16.mxu0 0
        %267 = vmatpush1.bf16.msra.mxu0 0
        %268 = vmatprep.subr.bf16.mxu0 0
        %269 = vmatpush1.bf16.msra.mxu0 0
        %270 = vmatprep.subr.bf16.mxu0 0
        %271 = vmatpush1.bf16.msra.mxu0 0
        %272 = vmatprep.subr.bf16.mxu0 0
        %273 = vmatpush1.bf16.msra.mxu0 0
        %274 = vmatprep.subr.bf16.mxu0 0
        %275 = vmatpush1.bf16.msra.mxu0 0
        %276 = vmatprep.subr.bf16.mxu0 0
        %277 = vmatpush1.bf16.msra.mxu0 0
        %278 = vmatprep.subr.bf16.mxu0 0
        %279 = vmatpush1.bf16.msra.mxu0 0
        %280 = vmatprep.subr.bf16.mxu0 0
        %281 = vmatpush1.bf16.msra.mxu0 0
        %282 = vmatprep.mubr.bf16.mxu0 0
        %283 = vmatmul.mubr.bf16.gmra.mrb[0].mxu0 %v248
        %v284 = vpop.f32.mrb[0].mxu0
        %v285 = vadd.f32 %v232, %v284
        %v286 = vpop.f32.mrb[0].mxu0
        %v287 = vpop.f32.mrb[0].mxu0
        %v288 = vpop.f32.mrb[0].mxu0
        %289 = vdwg.mxu0
        %v290 = vmax.f32 %v285, 0.0
        %v291 = vpack.c.bf16 %v290, %v290
        %v292 = vld [vmem:[%s3] sm:$0xf]
        %v293 = vld [vmem:[%s3 + $0x4] sm:$0xf]
        %v294 = vld [vmem:[%s3 + $0x8] sm:$0xf]
        %v295 = vld [vmem:[%s3 + $0xc] sm:$0xf]
        %v296 = vld [vmem:[%s3 + $0x10] sm:$0xf]
        %v297 = vld [vmem:[%s3 + $0x14] sm:$0xf]
        %v298 = vld [vmem:[%s3 + $0x18] sm:$0xf]
        %v299 = vld [vmem:[%s3 + $0x1c] sm:$0xf]
        %v308 = vunpack.c.l.b16 %v292
        %v309 = vunpack.c.l.b16 %v293
        %v310 = vunpack.c.l.b16 %v294
        %v311 = vunpack.c.l.b16 %v295
        %v312 = vunpack.c.l.b16 %v296
        %v313 = vunpack.c.l.b16 %v297
        %v314 = vunpack.c.l.b16 %v298
        %v315 = vunpack.c.l.b16 %v299
        %v316 = vpack.c.b16 %v309, %v308
        %v317 = vpack.c.b16 %v311, %v310
        %v318 = vpack.c.b16 %v313, %v312
        %v319 = vpack.c.b16 %v315, %v314
        %vm324 = vcmask 523264
        %v326 = vsel %vm324, %v291, 0
        %328 = vmatprep.subr.bf16.mxu0 0
        %329 = vmatpush1.bf16.msra.mxu0 %v316
        %330 = vmatprep.subr.bf16.mxu0 0
        %331 = vmatpush1.bf16.msra.mxu0 %v317
        %332 = vmatprep.subr.bf16.mxu0 0
        %333 = vmatpush1.bf16.msra.mxu0 %v318
        %334 = vmatprep.subr.bf16.mxu0 0
        %335 = vmatpush1.bf16.msra.mxu0 %v319
        %336 = vmatprep.subr.bf16.mxu0 0
        %337 = vmatpush1.bf16.msra.mxu0 0
        %338 = vmatprep.subr.bf16.mxu0 0
        %339 = vmatpush1.bf16.msra.mxu0 0
        %340 = vmatprep.subr.bf16.mxu0 0
        %341 = vmatpush1.bf16.msra.mxu0 0
        %342 = vmatprep.subr.bf16.mxu0 0
        %343 = vmatpush1.bf16.msra.mxu0 0
        %344 = vmatprep.subr.bf16.mxu0 0
        %345 = vmatpush1.bf16.msra.mxu0 0
        %346 = vmatprep.subr.bf16.mxu0 0
        %347 = vmatpush1.bf16.msra.mxu0 0
        %348 = vmatprep.subr.bf16.mxu0 0
        %349 = vmatpush1.bf16.msra.mxu0 0
        %350 = vmatprep.subr.bf16.mxu0 0
        %351 = vmatpush1.bf16.msra.mxu0 0
        %352 = vmatprep.subr.bf16.mxu0 0
        %353 = vmatpush1.bf16.msra.mxu0 0
        %354 = vmatprep.subr.bf16.mxu0 0
        %355 = vmatpush1.bf16.msra.mxu0 0
        %356 = vmatprep.subr.bf16.mxu0 0
        %357 = vmatpush1.bf16.msra.mxu0 0
        %358 = vmatprep.subr.bf16.mxu0 0
        %359 = vmatpush1.bf16.msra.mxu0 0
        %360 = vmatprep.mubr.bf16.mxu0 0
        %361 = vmatmul.mubr.bf16.gmra.mrb[0].mxu0 %v326
        %v362 = vpop.f32.mrb[0].mxu0
        %v363 = vadd.f32 0.0, %v362
        %v364 = vpop.f32.mrb[0].mxu0
        %v365 = vpop.f32.mrb[0].mxu0
        %v366 = vpop.f32.mrb[0].mxu0
        %367 = vdwg.mxu0
        %v368 = vadd.f32 %v221, %v363
        %v369 = vld [vmem:[%s4] sm:$0x1]
        %v370 = vlaneseq
        %v371 = vshrl.u32 %v370, 7
        %v372 = vsub.s32 0, %v371
        %v373 = vrot.slane %v369, %v372
        %v374 = vadd.f32 %v368, %v373
        %v375 = vsel %vm246, %v374, 0.0
        %376 = vadd.xlane.f32.xlu0 %v375
        %v377 = vpop.xlane.xlu0 %376
        %v378 = vmul.f32 %v374, %v374
        %v379 = vsel %vm246, %v378, 0.0
        %380 = vadd.xlane.f32.xlu0 %v379
        %v381 = vpop.xlane.xlu0 %380
        %v382 = vmul.f32 %v377, 0.03125
        %v383 = vmul.f32 %v381, 0.03125
        %v384 = vmul.f32 %v382, %v382
        %v385 = vsub.f32 %v383, %v384
        %v386 = vsub.f32 %v374, %v382
        %v387 = vadd.f32 %v385, 1e-05
        %v388 = vrsqrt.pop %v387
        %v389 = vmul.f32 %v386, %v388
        %v390 = vld [vmem:[%s4 + $0x1] sm:$0x1]
        %v391 = vlaneseq
        %v392 = vshrl.u32 %v391, 7
        %v393 = vsub.s32 0, %v392
        %v394 = vrot.slane %v390, %v393
        %v395 = vmul.f32 %v389, %v394
        %v396 = vld [vmem:[%s4 + $0x2] sm:$0x1]
        %v397 = vlaneseq
        %v398 = vshrl.u32 %v397, 7
        %v399 = vsub.s32 0, %v398
        %v400 = vrot.slane %v396, %v399
        %v401 = vadd.f32 %v395, %v400
        %402 = vst.msk [vmem:[%s215] sm:$0xff] %vm246, %v401
        %s403 = sand.u32 %s137, 1
        %s404 = scalar_lea.sflag [#allocation3], %s403
        %s405 = sand.u32 %s137, 1
        %s406 = smul.addr %s405, 8
        %s407 = scalar_lea.vmem [#allocation2], %s406
        // Predicated region
        $region41: #{tpu_custom_call.1} parent=39 // pred_check
          %p408 = pneg %p147
        $region42: #{tpu_custom_call.1} parent=39 // pred_check_branch
          %410 = sbr.rel (%p408) target = $region44
        $region43: #{tpu_custom_call.1} parent=39 // pred_region
          %s412 = ssub.s32 128, 128
          %413 = vsyncadd %s404, %s412
          %s414 = smul.addr %s19, 128
          %s415 = scalar_lea.hbm %s5, %s414
          %s417 = sshll.u32 %s407, 4
          %s418 = int_to_ptr.vmem [resolvable:$true] %s417
          %420 = dma.vmem_to_hbm [thread:$0]  %s418, 128, %s415, %s404
        $region44: #{tpu_custom_call.1} parent=39 // pred_fallthru
          _
      $region40: #{tpu_custom_call.1} parent=5 // pred_fallthru
        _
      %p421 = scmp.le.s32.totalorder 2, %s14
      // Predicated region
      $region45: #{tpu_custom_call.1} parent=5 // pred_check
        %p422 = pneg %p421
      $region46: #{tpu_custom_call.1} parent=5 // pred_check_branch
        %424 = sbr.rel (%p422) target = $region48
      $region47: #{tpu_custom_call.1} parent=5 // pred_region
        %s425 = ssub.s32 %s14, 2
        // Predicated region
        $region49: #{tpu_custom_call.1} parent=47 // pred_check
          %p426 = pneg %p153
        $region50: #{tpu_custom_call.1} parent=47 // pred_check_branch
          %428 = sbr.rel (%p426) target = $region52
        $region51: #{tpu_custom_call.1} parent=47 // pred_region
          %s429 = sand.u32 %s138, 1
          %s430 = scalar_lea.sflag [#allocation3], %s429
          %s431 = sand.u32 %s138, 1
          %s432 = smul.addr %s431, 8
          %s433 = scalar_lea.vmem [#allocation2], %s432
          %434 = dma.done %s430, 128
        $region52: #{tpu_custom_call.1} parent=47 // pred_fallthru
          _
      $region48: #{tpu_custom_call.1} parent=5 // pred_fallthru
        _
    $region6: #{tpu_custom_call.1} parent=1 // loop_footer
      %s18 = sadd.s32 1, %s14
    $region7: #{tpu_custom_call.1} parent=1 // loop_footer_branch
      %13 = sbr.rel target = $region3
    $region8: #{tpu_custom_call.1} parent=1 // loop_exit
      _
    %435 = vsyncpa [#allocation3], 1
    %s436 = scalar_lea.sflag [#allocation3], 1
    %437 = vsyncpa %s436, 1

</llo_original>
